<compile_context>
chip_gen: v5e
topology: v5e:2x2
jax: 0.10.0
libtpu: 0.0.40
codegen_flags: <defaults>
</compile_context>

<pallas_src>
import functools

import jax
import jax.numpy as jnp
from jax import lax
from jax.experimental import pallas as pl
from jax.experimental.pallas import tpu as pltpu

F_IN = 79        # dataset.num_features (atom feature vector length)
HIDDEN = 64      # hidden_channels
F_PAD = 128      # lane-padded input feature dim
H_PAD = 128      # lane-padded hidden dim
NEG = -1e30      # python float -> lowered as an immediate (NOT a captured jnp constant)


def _gat_layer(x_bf16, adj_bias, w_bf16, as_row, ad_col, bias):
    """PyG GATConv (heads=1, concat=True, negative_slope=0.2, add_self_loops=True).

    x_bf16:   (N, Fp) bf16   node features (lane-padded)
    adj_bias: (N, N)  f32    additive mask: 0 where edge j->i (incl. self loops), -1e30 otherwise
    w_bf16:   (Fp, Hp) bf16  lin weight (zero padded)
    as_row:   (1, Hp) f32    att_src     ad_col: (Hp, 1) f32 att_dst     bias: (1, Hp) f32
    """
    # Projection on the MXU (bf16 operands, f32 accumulation).
    xp = jnp.dot(x_bf16, w_bf16, preferred_element_type=jnp.float32)          # (N, Hp) f32

    # Attention terms as MXU matvecs (no XLU cross-lane reductions, no transpose).
    a_d = jnp.dot(xp, ad_col, preferred_element_type=jnp.float32)             # (N, 1)
    a_s = lax.dot_general(as_row, xp, (((1,), (1,)), ((), ())),
                          preferred_element_type=jnp.float32)                 # (1, N)

    # e[i, j] = LeakyReLU(a_dst.xp[i] + a_src.xp[j], slope=0.2); leaky = max(x, 0.2x).
    e = a_d + a_s                                                             # (N, N)
    e = jnp.maximum(e, 0.2 * e)
    logits = e + adj_bias                                                     # additive mask

    # Row softmax with deferred normalization. Masked entries underflow to exactly 0
    # in exp because every row has a finite max (self loops are always present).
    m = jnp.max(logits, axis=1, keepdims=True)                                # (N, 1)
    p = jnp.exp(logits - m)                                                   # (N, N) f32
    denom = jnp.sum(p, axis=1, keepdims=True)                                 # (N, 1) >= 1

    # Aggregation on the MXU in bf16 + EUP reciprocal for the 1/denom scale.
    agg = jnp.dot(p.astype(jnp.bfloat16), xp.astype(jnp.bfloat16),
                  preferred_element_type=jnp.float32)                         # (N, Hp)
    return agg * pl.reciprocal(denom, approx=True) + bias


def gepnet_kernel(x_ref, adjb_ref, bmask_ref,
                  w1_ref, as1_ref, ad1_ref, b1_ref,
                  w2_ref, as2_ref, ad2_ref, b2_ref,
                  wout_ref, bout_ref, out_ref, *, num_graphs):
    adj_bias = adjb_ref[...]
    bm = bmask_ref[...]                                       # (N, G) graph one-hot

    # conv1 -> relu -> dropout (eval mode: identity)
    h = _gat_layer(x_ref[...], adj_bias,
                   w1_ref[...], as1_ref[...], ad1_ref[...], b1_ref[...])
    h = jnp.maximum(h, 0.0)
    # TODO(synk): training-mode dropout (p=0.5) omitted; eval-mode forward is identity.

    # conv2 -> relu
    h = _gat_layer(h.astype(jnp.bfloat16), adj_bias,
                   w2_ref[...], as2_ref[...], ad2_ref[...], b2_ref[...])
    h = jnp.maximum(h, 0.0)

    # global max pool per graph + final Linear. Output is lane-dense (G, 128);
    # only column 0 carries the real scalar prediction (wout/bout zero-padded).
    wout = wout_ref[...]
    bout = bout_ref[...]
    for g in range(num_graphs):                               # static unroll, G is small
        mg = bm[:, g:g + 1]                                   # (N, 1)
        pooled = jnp.max(jnp.where(mg > 0, h, NEG), axis=0, keepdims=True)    # (1, Hp)
        out_ref[g:g + 1, :] = (jnp.dot(pooled, wout, preferred_element_type=jnp.float32)
                               + bout)


def _pad_to(a, shape):
    pads = [(0, t - s) for s, t in zip(a.shape, shape)]
    return jnp.pad(a, pads)


def prepare_params(params):
    """Zero-pad params to lane-dense 128-wide shapes; pre-cast matmul weights to bf16."""
    w1 = _pad_to(params["w1"], (F_PAD, H_PAD)).astype(jnp.bfloat16)
    w2 = _pad_to(params["w2"], (H_PAD, H_PAD)).astype(jnp.bfloat16)
    as1 = _pad_to(params["as1"], (1, H_PAD))
    as2 = _pad_to(params["as2"], (1, H_PAD))
    ad1 = _pad_to(params["ad1"].T, (H_PAD, 1))     # column layout for the MXU matvec
    ad2 = _pad_to(params["ad2"].T, (H_PAD, 1))
    b1 = _pad_to(params["b1"], (1, H_PAD))
    b2 = _pad_to(params["b2"], (1, H_PAD))
    wout = _pad_to(params["wout"], (H_PAD, H_PAD))  # only column 0 is real
    bout = _pad_to(params["bout"], (1, H_PAD))
    return (w1, as1, ad1, b1, w2, as2, ad2, b2, wout, bout)


def gepnet_forward(x, edge_index, batch_index, params, num_graphs):
    """x: (N, F_IN) f32, edge_index: (2, E) i32 [src; dst], batch_index: (N,) i32."""
    n = x.shape[0]
    # Additive attention mask: 0 for each edge j->i plus self loops (PyG GATConv
    # add_self_loops=True), -1e30 elsewhere.
    adj = jnp.zeros((n, n), jnp.float32)
    adj = adj.at[edge_index[1], edge_index[0]].set(1.0)
    adj = jnp.maximum(adj, jnp.eye(n, dtype=jnp.float32))
    adj_bias = jnp.where(adj > 0, 0.0, NEG).astype(jnp.float32)
    # Graph-membership one-hot with nodes on the sublane axis: (N, G).
    bmask = (batch_index[:, None] == jnp.arange(num_graphs)[None, :]).astype(jnp.float32)

    x_pad = _pad_to(x.astype(jnp.float32), (n, F_PAD)).astype(jnp.bfloat16)

    vmem = pl.BlockSpec(memory_space=pltpu.MemorySpace.VMEM)
    args = (x_pad, adj_bias, bmask) + prepare_params(params)
    out = pl.pallas_call(
        functools.partial(gepnet_kernel, num_graphs=num_graphs),
        out_shape=jax.ShapeDtypeStruct((num_graphs, H_PAD), jnp.float32),
        in_specs=[vmem] * len(args),
        out_specs=vmem,
    )(*args)
    return out[:, :1]                               # real prediction lives in column 0


def init_params(key):
    ks = jax.random.split(key, 10)
    s = 0.1
    return {
        # GATConv 1: lin weight (no bias), att_src, att_dst, bias
        "w1": s * jax.random.normal(ks[0], (F_IN, HIDDEN), jnp.float32),
        "as1": s * jax.random.normal(ks[1], (1, HIDDEN), jnp.float32),
        "ad1": s * jax.random.normal(ks[2], (1, HIDDEN), jnp.float32),
        "b1": s * jax.random.normal(ks[3], (1, HIDDEN), jnp.float32),
        # GATConv 2
        "w2": s * jax.random.normal(ks[4], (HIDDEN, HIDDEN), jnp.float32),
        "as2": s * jax.random.normal(ks[5], (1, HIDDEN), jnp.float32),
        "ad2": s * jax.random.normal(ks[6], (1, HIDDEN), jnp.float32),
        "b2": s * jax.random.normal(ks[7], (1, HIDDEN), jnp.float32),
        # Output Linear(hidden, 1)
        "wout": s * jax.random.normal(ks[8], (HIDDEN, 1), jnp.float32),
        "bout": s * jax.random.normal(ks[9], (1, 1), jnp.float32),
    }


if __name__ == "__main__":
    key = jax.random.PRNGKey(0)
    k_param, k_x = jax.random.split(key)
    params = init_params(k_param)

    # Small synthetic "molecular graph" batch: 2 graphs of 8 nodes each (N=16),
    # each graph is a bidirectional chain (like a peptide backbone).
    N, G = 16, 2
    x = jax.random.normal(k_x, (N, F_IN), jnp.float32)

    src, dst = [], []
    for g in range(G):
        base = g * 8
        for i in range(7):
            a, b = base + i, base + i + 1
            src += [a, b]
            dst += [b, a]
    edge_index = jnp.array([src, dst], dtype=jnp.int32)              # (2, E)
    batch_index = jnp.array([0] * 8 + [1] * 8, dtype=jnp.int32)      # (N,)

    out = gepnet_forward(x, edge_index, batch_index, params, num_graphs=G)
    out = jax.block_until_ready(out)
    assert out.shape == (G, 1)
    assert bool(jnp.all(jnp.isfinite(out)))
    print("KERNEL_OK")
</pallas_src>

<mosaic_0001>
module attributes {stable_mosaic.version = 11 : i64} {
  func.func @gepnet_kernel(%arg0: memref<16x128xbf16, #tpu.memory_space<vmem>>, %arg1: memref<16x16xf32, #tpu.memory_space<vmem>>, %arg2: memref<16x2xf32, #tpu.memory_space<vmem>>, %arg3: memref<128x128xbf16, #tpu.memory_space<vmem>>, %arg4: memref<1x128xf32, #tpu.memory_space<vmem>>, %arg5: memref<128x1xf32, #tpu.memory_space<vmem>>, %arg6: memref<1x128xf32, #tpu.memory_space<vmem>>, %arg7: memref<128x128xbf16, #tpu.memory_space<vmem>>, %arg8: memref<1x128xf32, #tpu.memory_space<vmem>>, %arg9: memref<128x1xf32, #tpu.memory_space<vmem>>, %arg10: memref<1x128xf32, #tpu.memory_space<vmem>>, %arg11: memref<128x128xf32, #tpu.memory_space<vmem>>, %arg12: memref<1x128xf32, #tpu.memory_space<vmem>>, %arg13: memref<2x128xf32, #tpu.memory_space<vmem>>) attributes {dimension_semantics = [], scalar_prefetch = 0 : i64, scratch_operands = 0 : i64, tpu.core_type = #tpu.core_type<tc>} {
    %c0 = arith.constant 0 : index
    %c0_0 = arith.constant 0 : index
    %0 = vector.load %arg1[%c0, %c0_0] : memref<16x16xf32, #tpu.memory_space<vmem>>, vector<16x16xf32>
    %c0_1 = arith.constant 0 : index
    %c0_2 = arith.constant 0 : index
    %1 = vector.load %arg2[%c0_1, %c0_2] : memref<16x2xf32, #tpu.memory_space<vmem>>, vector<16x2xf32>
    %c0_3 = arith.constant 0 : index
    %c0_4 = arith.constant 0 : index
    %2 = vector.load %arg0[%c0_3, %c0_4] : memref<16x128xbf16, #tpu.memory_space<vmem>>, vector<16x128xbf16>
    %c0_5 = arith.constant 0 : index
    %c0_6 = arith.constant 0 : index
    %3 = vector.load %arg3[%c0_5, %c0_6] : memref<128x128xbf16, #tpu.memory_space<vmem>>, vector<128x128xbf16>
    %c0_7 = arith.constant 0 : index
    %c0_8 = arith.constant 0 : index
    %4 = vector.load %arg4[%c0_7, %c0_8] : memref<1x128xf32, #tpu.memory_space<vmem>>, vector<1x128xf32>
    %c0_9 = arith.constant 0 : index
    %c0_10 = arith.constant 0 : index
    %5 = vector.load %arg5[%c0_9, %c0_10] : memref<128x1xf32, #tpu.memory_space<vmem>>, vector<128x1xf32>
    %c0_11 = arith.constant 0 : index
    %c0_12 = arith.constant 0 : index
    %6 = vector.load %arg6[%c0_11, %c0_12] : memref<1x128xf32, #tpu.memory_space<vmem>>, vector<1x128xf32>
    %cst = arith.constant dense<0.000000e+00> : vector<16x128xf32>
    %7 = tpu.matmul %2, %3, %cst {dimension_numbers = #tpu.dot_dimension_numbers<[1], [0], [0], [1], [0, 0, 1, 1], [], []>} : vector<16x128xbf16>, vector<128x128xbf16>, vector<16x128xf32> -> vector<16x128xf32>
    %cst_13 = arith.constant dense<0.000000e+00> : vector<16x1xf32>
    %8 = tpu.matmul %7, %5, %cst_13 {dimension_numbers = #tpu.dot_dimension_numbers<[1], [0], [0], [1], [0, 0, 1, 1], [], []>} : vector<16x128xf32>, vector<128x1xf32>, vector<16x1xf32> -> vector<16x1xf32>
    %cst_14 = arith.constant dense<0.000000e+00> : vector<1x16xf32>
    %9 = tpu.matmul %4, %7, %cst_14 {dimension_numbers = #tpu.dot_dimension_numbers<[1], [1], [0], [0], [0, 0, 1, 0], [], []>} : vector<1x128xf32>, vector<16x128xf32>, vector<1x16xf32> -> vector<1x16xf32>
    %10 = vector.broadcast %8 : vector<16x1xf32> to vector<16x16xf32>
    %11 = vector.broadcast %9 : vector<1x16xf32> to vector<16x16xf32>
    %12 = arith.addf %10, %11 : vector<16x16xf32>
    %cst_15 = arith.constant 2.000000e-01 : f32
    %13 = vector.broadcast %cst_15 : f32 to vector<16x16xf32>
    %14 = arith.mulf %13, %12 : vector<16x16xf32>
    %15 = arith.maximumf %12, %14 : vector<16x16xf32>
    %16 = arith.addf %15, %0 : vector<16x16xf32>
    %cst_16 = arith.constant dense<0xFF800000> : vector<16xf32>
    %17 = vector.multi_reduction <maximumf>, %16, %cst_16 [1] : vector<16x16xf32> to vector<16xf32>
    %18 = vector.shape_cast %17 : vector<16xf32> to vector<16x1xf32>
    %19 = vector.broadcast %18 : vector<16x1xf32> to vector<16x16xf32>
    %20 = arith.subf %16, %19 : vector<16x16xf32>
    %21 = math.exp %20 : vector<16x16xf32>
    %cst_17 = arith.constant dense<0.000000e+00> : vector<16xf32>
    %22 = vector.multi_reduction <add>, %21, %cst_17 [1] : vector<16x16xf32> to vector<16xf32>
    %23 = vector.shape_cast %22 : vector<16xf32> to vector<16x1xf32>
    %24 = arith.truncf %21 : vector<16x16xf32> to vector<16x16xbf16>
    %25 = arith.truncf %7 : vector<16x128xf32> to vector<16x128xbf16>
    %cst_18 = arith.constant dense<0.000000e+00> : vector<16x128xf32>
    %26 = tpu.matmul %24, %25, %cst_18 {dimension_numbers = #tpu.dot_dimension_numbers<[1], [0], [0], [1], [0, 0, 1, 1], [], []>} : vector<16x16xbf16>, vector<16x128xbf16>, vector<16x128xf32> -> vector<16x128xf32>
    %27 = tpu.reciprocal %23 {approx = true} : vector<16x1xf32> -> vector<16x1xf32>
    %28 = vector.broadcast %27 : vector<16x1xf32> to vector<16x128xf32>
    %29 = arith.mulf %26, %28 : vector<16x128xf32>
    %30 = vector.broadcast %6 : vector<1x128xf32> to vector<16x128xf32>
    %31 = arith.addf %29, %30 : vector<16x128xf32>
    %cst_19 = arith.constant 0.000000e+00 : f32
    %32 = vector.broadcast %cst_19 : f32 to vector<16x128xf32>
    %33 = arith.maximumf %31, %32 : vector<16x128xf32>
    %34 = arith.truncf %33 : vector<16x128xf32> to vector<16x128xbf16>
    %c0_20 = arith.constant 0 : index
    %c0_21 = arith.constant 0 : index
    %35 = vector.load %arg7[%c0_20, %c0_21] : memref<128x128xbf16, #tpu.memory_space<vmem>>, vector<128x128xbf16>
    %c0_22 = arith.constant 0 : index
    %c0_23 = arith.constant 0 : index
    %36 = vector.load %arg8[%c0_22, %c0_23] : memref<1x128xf32, #tpu.memory_space<vmem>>, vector<1x128xf32>
    %c0_24 = arith.constant 0 : index
    %c0_25 = arith.constant 0 : index
    %37 = vector.load %arg9[%c0_24, %c0_25] : memref<128x1xf32, #tpu.memory_space<vmem>>, vector<128x1xf32>
    %c0_26 = arith.constant 0 : index
    %c0_27 = arith.constant 0 : index
    %38 = vector.load %arg10[%c0_26, %c0_27] : memref<1x128xf32, #tpu.memory_space<vmem>>, vector<1x128xf32>
    %cst_28 = arith.constant dense<0.000000e+00> : vector<16x128xf32>
    %39 = tpu.matmul %34, %35, %cst_28 {dimension_numbers = #tpu.dot_dimension_numbers<[1], [0], [0], [1], [0, 0, 1, 1], [], []>} : vector<16x128xbf16>, vector<128x128xbf16>, vector<16x128xf32> -> vector<16x128xf32>
    %cst_29 = arith.constant dense<0.000000e+00> : vector<16x1xf32>
    %40 = tpu.matmul %39, %37, %cst_29 {dimension_numbers = #tpu.dot_dimension_numbers<[1], [0], [0], [1], [0, 0, 1, 1], [], []>} : vector<16x128xf32>, vector<128x1xf32>, vector<16x1xf32> -> vector<16x1xf32>
    %cst_30 = arith.constant dense<0.000000e+00> : vector<1x16xf32>
    %41 = tpu.matmul %36, %39, %cst_30 {dimension_numbers = #tpu.dot_dimension_numbers<[1], [1], [0], [0], [0, 0, 1, 0], [], []>} : vector<1x128xf32>, vector<16x128xf32>, vector<1x16xf32> -> vector<1x16xf32>
    %42 = vector.broadcast %40 : vector<16x1xf32> to vector<16x16xf32>
    %43 = vector.broadcast %41 : vector<1x16xf32> to vector<16x16xf32>
    %44 = arith.addf %42, %43 : vector<16x16xf32>
    %cst_31 = arith.constant 2.000000e-01 : f32
    %45 = vector.broadcast %cst_31 : f32 to vector<16x16xf32>
    %46 = arith.mulf %45, %44 : vector<16x16xf32>
    %47 = arith.maximumf %44, %46 : vector<16x16xf32>
    %48 = arith.addf %47, %0 : vector<16x16xf32>
    %cst_32 = arith.constant dense<0xFF800000> : vector<16xf32>
    %49 = vector.multi_reduction <maximumf>, %48, %cst_32 [1] : vector<16x16xf32> to vector<16xf32>
    %50 = vector.shape_cast %49 : vector<16xf32> to vector<16x1xf32>
    %51 = vector.broadcast %50 : vector<16x1xf32> to vector<16x16xf32>
    %52 = arith.subf %48, %51 : vector<16x16xf32>
    %53 = math.exp %52 : vector<16x16xf32>
    %cst_33 = arith.constant dense<0.000000e+00> : vector<16xf32>
    %54 = vector.multi_reduction <add>, %53, %cst_33 [1] : vector<16x16xf32> to vector<16xf32>
    %55 = vector.shape_cast %54 : vector<16xf32> to vector<16x1xf32>
    %56 = arith.truncf %53 : vector<16x16xf32> to vector<16x16xbf16>
    %57 = arith.truncf %39 : vector<16x128xf32> to vector<16x128xbf16>
    %cst_34 = arith.constant dense<0.000000e+00> : vector<16x128xf32>
    %58 = tpu.matmul %56, %57, %cst_34 {dimension_numbers = #tpu.dot_dimension_numbers<[1], [0], [0], [1], [0, 0, 1, 1], [], []>} : vector<16x16xbf16>, vector<16x128xbf16>, vector<16x128xf32> -> vector<16x128xf32>
    %59 = tpu.reciprocal %55 {approx = true} : vector<16x1xf32> -> vector<16x1xf32>
    %60 = vector.broadcast %59 : vector<16x1xf32> to vector<16x128xf32>
    %61 = arith.mulf %58, %60 : vector<16x128xf32>
    %62 = vector.broadcast %38 : vector<1x128xf32> to vector<16x128xf32>
    %63 = arith.addf %61, %62 : vector<16x128xf32>
    %cst_35 = arith.constant 0.000000e+00 : f32
    %64 = vector.broadcast %cst_35 : f32 to vector<16x128xf32>
    %65 = arith.maximumf %63, %64 : vector<16x128xf32>
    %c0_36 = arith.constant 0 : index
    %c0_37 = arith.constant 0 : index
    %66 = vector.load %arg11[%c0_36, %c0_37] : memref<128x128xf32, #tpu.memory_space<vmem>>, vector<128x128xf32>
    %c0_38 = arith.constant 0 : index
    %c0_39 = arith.constant 0 : index
    %67 = vector.load %arg12[%c0_38, %c0_39] : memref<1x128xf32, #tpu.memory_space<vmem>>, vector<1x128xf32>
    %68 = vector.extract_strided_slice %1 {offsets = [0, 0], sizes = [16, 1], strides = [1, 1]} : vector<16x2xf32> to vector<16x1xf32>
    %cst_40 = arith.constant 0.000000e+00 : f32
    %69 = vector.broadcast %cst_40 : f32 to vector<16x1xf32>
    %70 = arith.cmpf ogt, %68, %69 : vector<16x1xf32>
    %cst_41 = arith.constant -1.000000e+30 : f32
    %71 = vector.shape_cast %70 : vector<16x1xi1> to vector<16x1xi1>
    %72 = vector.broadcast %71 : vector<16x1xi1> to vector<16x128xi1>
    %73 = vector.broadcast %cst_41 : f32 to vector<16x128xf32>
    %74 = arith.select %72, %65, %73 : vector<16x128xi1>, vector<16x128xf32>
    %cst_42 = arith.constant dense<0xFF800000> : vector<128xf32>
    %75 = vector.multi_reduction <maximumf>, %74, %cst_42 [0] : vector<16x128xf32> to vector<128xf32>
    %76 = vector.shape_cast %75 : vector<128xf32> to vector<1x128xf32>
    %cst_43 = arith.constant dense<0.000000e+00> : vector<1x128xf32>
    %77 = tpu.matmul %76, %66, %cst_43 {dimension_numbers = #tpu.dot_dimension_numbers<[1], [0], [0], [1], [0, 0, 1, 1], [], []>} : vector<1x128xf32>, vector<128x128xf32>, vector<1x128xf32> -> vector<1x128xf32>
    %78 = arith.addf %77, %67 : vector<1x128xf32>
    %c0_44 = arith.constant 0 : index
    %c0_45 = arith.constant 0 : index
    %79 = vector.load %arg13[%c0_44, %c0_45] : memref<2x128xf32, #tpu.memory_space<vmem>>, vector<1x128xf32>
    tpu.vector_store %arg13[%c0_44, %c0_45], %78 {strides = array<i32>} : memref<2x128xf32, #tpu.memory_space<vmem>>, vector<1x128xf32>,
    %80 = vector.extract_strided_slice %1 {offsets = [0, 1], sizes = [16, 1], strides = [1, 1]} : vector<16x2xf32> to vector<16x1xf32>
    %cst_46 = arith.constant 0.000000e+00 : f32
    %81 = vector.broadcast %cst_46 : f32 to vector<16x1xf32>
    %82 = arith.cmpf ogt, %80, %81 : vector<16x1xf32>
    %cst_47 = arith.constant -1.000000e+30 : f32
    %83 = vector.shape_cast %82 : vector<16x1xi1> to vector<16x1xi1>
    %84 = vector.broadcast %83 : vector<16x1xi1> to vector<16x128xi1>
    %85 = vector.broadcast %cst_47 : f32 to vector<16x128xf32>
    %86 = arith.select %84, %65, %85 : vector<16x128xi1>, vector<16x128xf32>
    %cst_48 = arith.constant dense<0xFF800000> : vector<128xf32>
    %87 = vector.multi_reduction <maximumf>, %86, %cst_48 [0] : vector<16x128xf32> to vector<128xf32>
    %88 = vector.shape_cast %87 : vector<128xf32> to vector<1x128xf32>
    %cst_49 = arith.constant dense<0.000000e+00> : vector<1x128xf32>
    %89 = tpu.matmul %88, %66, %cst_49 {dimension_numbers = #tpu.dot_dimension_numbers<[1], [0], [0], [1], [0, 0, 1, 1], [], []>} : vector<1x128xf32>, vector<128x128xf32>, vector<1x128xf32> -> vector<1x128xf32>
    %90 = arith.addf %89, %67 : vector<1x128xf32>
    %c1 = arith.constant 1 : index
    %c0_50 = arith.constant 0 : index
    %91 = vector.load %arg13[%c1, %c0_50] : memref<2x128xf32, #tpu.memory_space<vmem>>, vector<1x128xf32>
    tpu.vector_store %arg13[%c1, %c0_50], %90 {strides = array<i32>} : memref<2x128xf32, #tpu.memory_space<vmem>>, vector<1x128xf32>,
    return
  }
}

</mosaic_0001>

<llo_original>
// kernel: tpu_custom_call.1
$region0: #{tpu_custom_call.1}
  #allocation0 [shape = 'u32[]', space=smem, size = 0x4, offset = 0x4, fixed_abs, tag = 'smem constant byte address 0x4 - core index']
  #allocation1 [shape = 'u32[72,128]{1,0:T(1,128)}', space=vmem, size = 0x9000, scoped, tag = 'internal scratch']
  %s0 = inlined_call_operand.hbm [shape: bf16[16,128], index: 0, kind: input, shape index: {}]
  %s1 = inlined_call_operand.vmem [shape: f32[16,16], index: 1, kind: input, shape index: {}]
  %s2 = inlined_call_operand.vmem [shape: f32[16,2], index: 2, kind: input, shape index: {}]
  %s3 = inlined_call_operand.vmem [shape: bf16[128,128], index: 3, kind: input, shape index: {}]
  %s4 = inlined_call_operand.vmem [shape: f32[1,128], index: 4, kind: input, shape index: {}]
  %s5 = inlined_call_operand.vmem [shape: f32[128,1], index: 5, kind: input, shape index: {}]
  %s6 = inlined_call_operand.vmem [shape: f32[1,128], index: 6, kind: input, shape index: {}]
  %s7 = inlined_call_operand.vmem [shape: bf16[128,128], index: 7, kind: input, shape index: {}]
  %s8 = inlined_call_operand.vmem [shape: f32[1,128], index: 8, kind: input, shape index: {}]
  %s9 = inlined_call_operand.vmem [shape: f32[128,1], index: 9, kind: input, shape index: {}]
  %s10 = inlined_call_operand.vmem [shape: f32[1,128], index: 10, kind: input, shape index: {}]
  %s11 = inlined_call_operand.vmem [shape: f32[128,128], index: 11, kind: input, shape index: {}]
  %s12 = inlined_call_operand.vmem [shape: f32[1,128], index: 12, kind: input, shape index: {}]
  %s13 = inlined_call_operand.hbm [shape: f32[2,128], index: 13, kind: output, shape index: {}]
  %s14 = sld [smem:[#allocation0]]
  $region66: #{tpu_custom_call.1} parent=0
    _
  %s16 = ssub.s32 1, %s14
  %s17 = scalar_select 0, %s16, %s14
  $region1: #{tpu_custom_call.1} parent=0
    #allocation2 [shape = 'u8[4096]{0}', space=vmem, size = 0x1000, scoped, tag = 'input window, operand 0, single buffered']
    #allocation3 [shape = 's32[1]{0}', space=sflag, size = 0x4, scoped, tag = 'scoped memory for tpu_custom_call.1']
    #allocation4 [shape = 's32[1]{0}', space=sflag, size = 0x4, scoped, tag = 'scoped memory for tpu_custom_call.1']
    #allocation5 [shape = 'u8[1024]{0}', space=vmem, size = 0x400, scoped, tag = 'output window, operand 0, single buffered']
    %18 = vsyncpa [#allocation3], 0
    %19 = vsyncpa [#allocation4], 0
    // Predicated region
    $region2: #{tpu_custom_call.1} parent=1 // pred_check
      _
    $region3: #{tpu_custom_call.1} parent=1 // pred_check_branch
      %21 = sbr.rel (0) target = $region5
    $region4: #{tpu_custom_call.1} parent=1 // pred_region
      %23 = vsyncadd [#allocation3], 0
      %s24 = sshll.u32 %s0, 4
      %s25 = int_to_ptr.hbm [resolvable:$true] %s24
      %s26 = sshll.u32 [#allocation2], 4
      %s27 = int_to_ptr.vmem [resolvable:$true] %s26
      %32 = dma.hbm_to_vmem [thread:$0]  %s25, 128, %s27, [#allocation3], 64, 64, 4
    $region5: #{tpu_custom_call.1} parent=1 // pred_fallthru
      _
    // Predicated region
    $region6: #{tpu_custom_call.1} parent=1 // pred_check
      _
    $region7: #{tpu_custom_call.1} parent=1 // pred_check_branch
      %34 = sbr.rel (0) target = $region9
    $region8: #{tpu_custom_call.1} parent=1 // pred_region
      _
    $region9: #{tpu_custom_call.1} parent=1 // pred_fallthru
      _
    // Predicated region
    $region10: #{tpu_custom_call.1} parent=1 // pred_check
      _
    $region11: #{tpu_custom_call.1} parent=1 // pred_check_branch
      %36 = sbr.rel (0) target = $region13
    $region12: #{tpu_custom_call.1} parent=1 // pred_region
      _
    $region13: #{tpu_custom_call.1} parent=1 // pred_fallthru
      _
    // Predicated region
    $region14: #{tpu_custom_call.1} parent=1 // pred_check
      _
    $region15: #{tpu_custom_call.1} parent=1 // pred_check_branch
      %38 = sbr.rel (0) target = $region17
    $region16: #{tpu_custom_call.1} parent=1 // pred_region
      _
    $region17: #{tpu_custom_call.1} parent=1 // pred_fallthru
      _
    // Predicated region
    $region18: #{tpu_custom_call.1} parent=1 // pred_check
      _
    $region19: #{tpu_custom_call.1} parent=1 // pred_check_branch
      %40 = sbr.rel (0) target = $region21
    $region20: #{tpu_custom_call.1} parent=1 // pred_region
      _
    $region21: #{tpu_custom_call.1} parent=1 // pred_fallthru
      _
    // Predicated region
    $region22: #{tpu_custom_call.1} parent=1 // pred_check
      _
    $region23: #{tpu_custom_call.1} parent=1 // pred_check_branch
      %42 = sbr.rel (0) target = $region25
    $region24: #{tpu_custom_call.1} parent=1 // pred_region
      _
    $region25: #{tpu_custom_call.1} parent=1 // pred_fallthru
      _
    // Predicated region
    $region26: #{tpu_custom_call.1} parent=1 // pred_check
      _
    $region27: #{tpu_custom_call.1} parent=1 // pred_check_branch
      %44 = sbr.rel (0) target = $region29
    $region28: #{tpu_custom_call.1} parent=1 // pred_region
      _
    $region29: #{tpu_custom_call.1} parent=1 // pred_fallthru
      _
    // Predicated region
    $region30: #{tpu_custom_call.1} parent=1 // pred_check
      _
    $region31: #{tpu_custom_call.1} parent=1 // pred_check_branch
      %46 = sbr.rel (0) target = $region33
    $region32: #{tpu_custom_call.1} parent=1 // pred_region
      _
    $region33: #{tpu_custom_call.1} parent=1 // pred_fallthru
      _
    // Predicated region
    $region34: #{tpu_custom_call.1} parent=1 // pred_check
      _
    $region35: #{tpu_custom_call.1} parent=1 // pred_check_branch
      %48 = sbr.rel (0) target = $region37
    $region36: #{tpu_custom_call.1} parent=1 // pred_region
      _
    $region37: #{tpu_custom_call.1} parent=1 // pred_fallthru
      _
    // Predicated region
    $region38: #{tpu_custom_call.1} parent=1 // pred_check
      _
    $region39: #{tpu_custom_call.1} parent=1 // pred_check_branch
      %50 = sbr.rel (0) target = $region41
    $region40: #{tpu_custom_call.1} parent=1 // pred_region
      _
    $region41: #{tpu_custom_call.1} parent=1 // pred_fallthru
      _
    // Predicated region
    $region42: #{tpu_custom_call.1} parent=1 // pred_check
      _
    $region43: #{tpu_custom_call.1} parent=1 // pred_check_branch
      %52 = sbr.rel (0) target = $region45
    $region44: #{tpu_custom_call.1} parent=1 // pred_region
      _
    $region45: #{tpu_custom_call.1} parent=1 // pred_fallthru
      _
    // Predicated region
    $region46: #{tpu_custom_call.1} parent=1 // pred_check
      _
    $region47: #{tpu_custom_call.1} parent=1 // pred_check_branch
      %54 = sbr.rel (0) target = $region49
    $region48: #{tpu_custom_call.1} parent=1 // pred_region
      _
    $region49: #{tpu_custom_call.1} parent=1 // pred_fallthru
      _
    // Predicated region
    $region50: #{tpu_custom_call.1} parent=1 // pred_check
      _
    $region51: #{tpu_custom_call.1} parent=1 // pred_check_branch
      %56 = sbr.rel (0) target = $region53
    $region52: #{tpu_custom_call.1} parent=1 // pred_region
      _
    $region53: #{tpu_custom_call.1} parent=1 // pred_fallthru
      _
    // Predicated region
    $region54: #{tpu_custom_call.1} parent=1 // pred_check
      _
    $region55: #{tpu_custom_call.1} parent=1 // pred_check_branch
      %58 = sbr.rel (0) target = $region57
    $region56: #{tpu_custom_call.1} parent=1 // pred_region
      %60 = dma.done [#allocation3], 128
    $region57: #{tpu_custom_call.1} parent=1 // pred_fallthru
      _
    %v62 = vld [vmem:[%s1] sm:$0xff]
    %v63 = vld [vmem:[%s1 + $0x8] sm:$0xff]
    %v64 = vld [vmem:[%s2] sm:$0xff]
    %v65 = vld [vmem:[%s2 + $0x8] sm:$0xff]
    %v66 = vld [vmem:[#allocation2] sm:$0xf]
    %v67 = vld [vmem:[#allocation2 + $0x4] sm:$0xf]
    %v68 = vld [vmem:[%s3] sm:$0xf]
    %v69 = vld [vmem:[%s3 + $0x4] sm:$0xf]
    %v70 = vld [vmem:[%s3 + $0x8] sm:$0xf]
    %v71 = vld [vmem:[%s3 + $0xc] sm:$0xf]
    %v72 = vld [vmem:[%s3 + $0x10] sm:$0xf]
    %v73 = vld [vmem:[%s3 + $0x14] sm:$0xf]
    %v74 = vld [vmem:[%s3 + $0x18] sm:$0xf]
    %v75 = vld [vmem:[%s3 + $0x1c] sm:$0xf]
    %v76 = vld [vmem:[%s3 + $0x20] sm:$0xf]
    %v77 = vld [vmem:[%s3 + $0x24] sm:$0xf]
    %v78 = vld [vmem:[%s3 + $0x28] sm:$0xf]
    %v79 = vld [vmem:[%s3 + $0x2c] sm:$0xf]
    %v80 = vld [vmem:[%s3 + $0x30] sm:$0xf]
    %v81 = vld [vmem:[%s3 + $0x34] sm:$0xf]
    %v82 = vld [vmem:[%s3 + $0x38] sm:$0xf]
    %v83 = vld [vmem:[%s3 + $0x3c] sm:$0xf]
    %v84 = vld [vmem:[%s4] sm:$0x1]
    %v85 = vld [vmem:[%s5] sm:$0xff]
    %v86 = vld [vmem:[%s5 + $0x8] sm:$0xff]
    %v87 = vld [vmem:[%s5 + $0x10] sm:$0xff]
    %v88 = vld [vmem:[%s5 + $0x18] sm:$0xff]
    %v89 = vld [vmem:[%s5 + $0x20] sm:$0xff]
    %v90 = vld [vmem:[%s5 + $0x28] sm:$0xff]
    %v91 = vld [vmem:[%s5 + $0x30] sm:$0xff]
    %v92 = vld [vmem:[%s5 + $0x38] sm:$0xff]
    %v93 = vld [vmem:[%s5 + $0x40] sm:$0xff]
    %v94 = vld [vmem:[%s5 + $0x48] sm:$0xff]
    %v95 = vld [vmem:[%s5 + $0x50] sm:$0xff]
    %v96 = vld [vmem:[%s5 + $0x58] sm:$0xff]
    %v97 = vld [vmem:[%s5 + $0x60] sm:$0xff]
    %v98 = vld [vmem:[%s5 + $0x68] sm:$0xff]
    %v99 = vld [vmem:[%s5 + $0x70] sm:$0xff]
    %v100 = vld [vmem:[%s5 + $0x78] sm:$0xff]
    %v101 = vld [vmem:[%s6] sm:$0x1]
    %v104 = vunpack.c.l.b16 %v66
    %v105 = vunpack.c.l.b16 %v67
    %v106 = vpack.c.b16 %v105, %v104
    %v124 = vunpack.c.l.b16 %v68
    %v125 = vunpack.c.l.b16 %v69
    %v126 = vunpack.c.l.b16 %v70
    %v127 = vunpack.c.l.b16 %v71
    %v128 = vunpack.c.l.b16 %v72
    %v129 = vunpack.c.l.b16 %v73
    %v130 = vunpack.c.l.b16 %v74
    %v131 = vunpack.c.l.b16 %v75
    %v132 = vunpack.c.l.b16 %v76
    %v133 = vunpack.c.l.b16 %v77
    %v134 = vunpack.c.l.b16 %v78
    %v135 = vunpack.c.l.b16 %v79
    %v136 = vunpack.c.l.b16 %v80
    %v137 = vunpack.c.l.b16 %v81
    %v138 = vunpack.c.l.b16 %v82
    %v139 = vunpack.c.l.b16 %v83
    %v140 = vpack.c.b16 %v125, %v124
    %v141 = vpack.c.b16 %v127, %v126
    %v142 = vpack.c.b16 %v129, %v128
    %v143 = vpack.c.b16 %v131, %v130
    %v144 = vpack.c.b16 %v133, %v132
    %v145 = vpack.c.b16 %v135, %v134
    %v146 = vpack.c.b16 %v137, %v136
    %v147 = vpack.c.b16 %v139, %v138
    %156 = vmatpush.bf16.msra.mxu0 %v147
    %157 = vmatpush.bf16.msra.mxu0 %v146
    %158 = vmatpush.bf16.msra.mxu0 %v145
    %159 = vmatpush.bf16.msra.mxu0 %v144
    %160 = vmatpush.bf16.msra.mxu0 %v143
    %161 = vmatpush.bf16.msra.mxu0 %v142
    %162 = vmatpush.bf16.msra.mxu0 %v141
    %163 = vmatpush.bf16.msra.mxu0 %v140
    %164 = vmatmul.bf16.gmra.mxu0 %v106
    %v165 = vpop.f32.mrf.mxu0
    %v166 = vadd.f32 0.0, %v165
    %v167 = vpop.f32.mrf.mxu0
    %v168 = vadd.f32 0.0, %v167
    %169 = vdwg.mxu0
    %170 = vmatpush.msra.mxu0 %v100
    %171 = vmatpush.msra.mxu0 %v99
    %172 = vmatpush.msra.mxu0 %v98
    %173 = vmatpush.msra.mxu0 %v97
    %174 = vmatpush.msra.mxu0 %v96
    %175 = vmatpush.msra.mxu0 %v95
    %176 = vmatpush.msra.mxu0 %v94
    %177 = vmatpush.msra.mxu0 %v93
    %178 = vmatpush.msra.mxu0 %v92
    %179 = vmatpush.msra.mxu0 %v91
    %180 = vmatpush.msra.mxu0 %v90
    %181 = vmatpush.msra.mxu0 %v89
    %182 = vmatpush.msra.mxu0 %v88
    %183 = vmatpush.msra.mxu0 %v87
    %184 = vmatpush.msra.mxu0 %v86
    %185 = vmatpush.msra.mxu0 %v85
    %186 = vmatmul.f32.gmra.mxu0 %v166
    %v187 = vpop.f32.mrf.mxu0
    %v188 = vadd.f32 0.0, %v187
    %189 = vmatmul.f32.gmra.mxu0 %v168
    %v190 = vpop.f32.mrf.mxu0
    %v191 = vadd.f32 0.0, %v190
    %192 = vdwg.mxu0
    %193 = vmatpush.xpose.msra.mxu0 0.0
    %194 = vmatpush.xpose.msra.mxu0 0.0
    %195 = vmatpush.xpose.msra.mxu0 0.0
    %196 = vmatpush.xpose.msra.mxu0 0.0
    %197 = vmatpush.xpose.msra.mxu0 0.0
    %198 = vmatpush.xpose.msra.mxu0 0.0
    %199 = vmatpush.xpose.msra.mxu0 0.0
    %200 = vmatpush.xpose.msra.mxu0 0.0
    %201 = vmatpush.xpose.msra.mxu0 0.0
    %202 = vmatpush.xpose.msra.mxu0 0.0
    %203 = vmatpush.xpose.msra.mxu0 0.0
    %204 = vmatpush.xpose.msra.mxu0 0.0
    %205 = vmatpush.xpose.msra.mxu0 0.0
    %206 = vmatpush.xpose.msra.mxu0 0.0
    %207 = vmatpush.xpose.msra.mxu0 %v168
    %208 = vmatpush.xpose.msra.mxu0 %v166
    %209 = vmatmul.f32.gmra.mxu0 %v84
    %v210 = vpop.f32.mrf.mxu0
    %v211 = vadd.f32 0.0, %v210
    %212 = vdwg.mxu0
    %214 = vset.pattern.permute.xlu0 0
    %215 = vperm.xlu0 %214, %v188
    %v216 = vpop.permute.xlu0 %215
    %219 = vset.pattern.permute.xlu0 0
    %220 = vperm.xlu0 %219, %v191
    %v221 = vpop.permute.xlu0 %220
    %v223 = vperm.slane %v211, 0
    %v224 = vadd.f32 %v216, %v223
    %v225 = vadd.f32 %v221, %v223
    %v226 = vmul.f32 %v224, 0.2
    %v227 = vmul.f32 %v225, 0.2
    %v228 = vmax.f32 %v224, %v226
    %v229 = vmax.f32 %v225, %v227
    %v230 = vadd.f32 %v228, %v62
    %v231 = vadd.f32 %v229, %v63
    %vm232 = vcmask 130048
    %v233 = vsel %vm232, %v230, -inf
    %234 = vmax.xlane.f32.xlu0 %v233
    %v235 = vpop.xlane.xlu0 %234
    %v236 = vsel %vm232, %v231, -inf
    %237 = vmax.xlane.f32.xlu0 %v236
    %v238 = vpop.xlane.xlu0 %237
    %v239 = vsub.f32 %v230, %v235
    %v240 = vsub.f32 %v231, %v238
    %v241 = vmul.f32 %v239, 1.442695
    %v242 = vpow.pop %v241
    %v243 = vmul.f32 %v240, 1.442695
    %v244 = vpow.pop %v243
    %v245 = vsel %vm232, %v242, 0.0
    %246 = vadd.xlane.f32.xlu0 %v245
    %v247 = vpop.xlane.xlu0 %246
    %v248 = vsel %vm232, %v244, 0.0
    %249 = vadd.xlane.f32.xlu0 %v248
    %v250 = vpop.xlane.xlu0 %249
    %v251 = vpack.c.bf16 %v244, %v242
    %v252 = vpack.c.bf16 %v168, %v166
    %v254 = vsel %vm232, %v251, 0
    %256 = vmatpush.bf16.msra.mxu0 0
    %257 = vmatpush.bf16.msra.mxu0 0
    %258 = vmatpush.bf16.msra.mxu0 0
    %259 = vmatpush.bf16.msra.mxu0 0
    %260 = vmatpush.bf16.msra.mxu0 0
    %261 = vmatpush.bf16.msra.mxu0 0
    %262 = vmatpush.bf16.msra.mxu0 0
    %263 = vmatpush.bf16.msra.mxu0 %v252
    %264 = vmatmul.bf16.gmra.mxu0 %v254
    %v265 = vpop.f32.mrf.mxu0
    %v266 = vadd.f32 0.0, %v265
    %v267 = vpop.f32.mrf.mxu0
    %v268 = vadd.f32 0.0, %v267
    %269 = vdwg.mxu0
    %v270 = vrcp.pop %v247
    %v271 = vrcp.pop %v250
    %v272 = vmul.f32 %v266, %v270
    %v273 = vmul.f32 %v268, %v271
    %v275 = vperm.slane %v101, 0
    %v277 = vadd.f32 %v272, %v275
    %v278 = vadd.f32 %v273, %v275
    %v279 = vmax.f32 %v277, 0.0
    %v280 = vmax.f32 %v278, 0.0
    %v281 = vpack.c.bf16 %v280, %v279
    %v282 = vld [vmem:[%s7] sm:$0xf]
    %v283 = vld [vmem:[%s7 + $0x4] sm:$0xf]
    %v284 = vld [vmem:[%s7 + $0x8] sm:$0xf]
    %v285 = vld [vmem:[%s7 + $0xc] sm:$0xf]
    %v286 = vld [vmem:[%s7 + $0x10] sm:$0xf]
    %v287 = vld [vmem:[%s7 + $0x14] sm:$0xf]
    %v288 = vld [vmem:[%s7 + $0x18] sm:$0xf]
    %v289 = vld [vmem:[%s7 + $0x1c] sm:$0xf]
    %v290 = vld [vmem:[%s7 + $0x20] sm:$0xf]
    %v291 = vld [vmem:[%s7 + $0x24] sm:$0xf]
    %v292 = vld [vmem:[%s7 + $0x28] sm:$0xf]
    %v293 = vld [vmem:[%s7 + $0x2c] sm:$0xf]
    %v294 = vld [vmem:[%s7 + $0x30] sm:$0xf]
    %v295 = vld [vmem:[%s7 + $0x34] sm:$0xf]
    %v296 = vld [vmem:[%s7 + $0x38] sm:$0xf]
    %v297 = vld [vmem:[%s7 + $0x3c] sm:$0xf]
    %v298 = vld [vmem:[%s8] sm:$0x1]
    %v299 = vld [vmem:[%s9] sm:$0xff]
    %v300 = vld [vmem:[%s9 + $0x8] sm:$0xff]
    %v301 = vld [vmem:[%s9 + $0x10] sm:$0xff]
    %v302 = vld [vmem:[%s9 + $0x18] sm:$0xff]
    %v303 = vld [vmem:[%s9 + $0x20] sm:$0xff]
    %v304 = vld [vmem:[%s9 + $0x28] sm:$0xff]
    %v305 = vld [vmem:[%s9 + $0x30] sm:$0xff]
    %v306 = vld [vmem:[%s9 + $0x38] sm:$0xff]
    %v307 = vld [vmem:[%s9 + $0x40] sm:$0xff]
    %v308 = vld [vmem:[%s9 + $0x48] sm:$0xff]
    %v309 = vld [vmem:[%s9 + $0x50] sm:$0xff]
    %v310 = vld [vmem:[%s9 + $0x58] sm:$0xff]
    %v311 = vld [vmem:[%s9 + $0x60] sm:$0xff]
    %v312 = vld [vmem:[%s9 + $0x68] sm:$0xff]
    %v313 = vld [vmem:[%s9 + $0x70] sm:$0xff]
    %v314 = vld [vmem:[%s9 + $0x78] sm:$0xff]
    %v315 = vld [vmem:[%s10] sm:$0x1]
    %v332 = vunpack.c.l.b16 %v282
    %v333 = vunpack.c.l.b16 %v283
    %v334 = vunpack.c.l.b16 %v284
    %v335 = vunpack.c.l.b16 %v285
    %v336 = vunpack.c.l.b16 %v286
    %v337 = vunpack.c.l.b16 %v287
    %v338 = vunpack.c.l.b16 %v288
    %v339 = vunpack.c.l.b16 %v289
    %v340 = vunpack.c.l.b16 %v290
    %v341 = vunpack.c.l.b16 %v291
    %v342 = vunpack.c.l.b16 %v292
    %v343 = vunpack.c.l.b16 %v293
    %v344 = vunpack.c.l.b16 %v294
    %v345 = vunpack.c.l.b16 %v295
    %v346 = vunpack.c.l.b16 %v296
    %v347 = vunpack.c.l.b16 %v297
    %v348 = vpack.c.b16 %v333, %v332
    %v349 = vpack.c.b16 %v335, %v334
    %v350 = vpack.c.b16 %v337, %v336
    %v351 = vpack.c.b16 %v339, %v338
    %v352 = vpack.c.b16 %v341, %v340
    %v353 = vpack.c.b16 %v343, %v342
    %v354 = vpack.c.b16 %v345, %v344
    %v355 = vpack.c.b16 %v347, %v346
    %364 = vmatpush.bf16.msra.mxu0 %v355
    %365 = vmatpush.bf16.msra.mxu0 %v354
    %366 = vmatpush.bf16.msra.mxu0 %v353
    %367 = vmatpush.bf16.msra.mxu0 %v352
    %368 = vmatpush.bf16.msra.mxu0 %v351
    %369 = vmatpush.bf16.msra.mxu0 %v350
    %370 = vmatpush.bf16.msra.mxu0 %v349
    %371 = vmatpush.bf16.msra.mxu0 %v348
    %372 = vmatmul.bf16.gmra.mxu0 %v281
    %v373 = vpop.f32.mrf.mxu0
    %v374 = vadd.f32 0.0, %v373
    %v375 = vpop.f32.mrf.mxu0
    %v376 = vadd.f32 0.0, %v375
    %377 = vdwg.mxu0
    %378 = vmatpush.msra.mxu0 %v314
    %379 = vmatpush.msra.mxu0 %v313
    %380 = vmatpush.msra.mxu0 %v312
    %381 = vmatpush.msra.mxu0 %v311
    %382 = vmatpush.msra.mxu0 %v310
    %383 = vmatpush.msra.mxu0 %v309
    %384 = vmatpush.msra.mxu0 %v308
    %385 = vmatpush.msra.mxu0 %v307
    %386 = vmatpush.msra.mxu0 %v306
    %387 = vmatpush.msra.mxu0 %v305
    %388 = vmatpush.msra.mxu0 %v304
    %389 = vmatpush.msra.mxu0 %v303
    %390 = vmatpush.msra.mxu0 %v302
    %391 = vmatpush.msra.mxu0 %v301
    %392 = vmatpush.msra.mxu0 %v300
    %393 = vmatpush.msra.mxu0 %v299
    %394 = vmatmul.f32.gmra.mxu0 %v374
    %v395 = vpop.f32.mrf.mxu0
    %v396 = vadd.f32 0.0, %v395
    %397 = vmatmul.f32.gmra.mxu0 %v376
    %v398 = vpop.f32.mrf.mxu0
    %v399 = vadd.f32 0.0, %v398
    %400 = vdwg.mxu0
    %401 = vmatpush.xpose.msra.mxu0 0.0
    %402 = vmatpush.xpose.msra.mxu0 0.0
    %403 = vmatpush.xpose.msra.mxu0 0.0
    %404 = vmatpush.xpose.msra.mxu0 0.0
    %405 = vmatpush.xpose.msra.mxu0 0.0
    %406 = vmatpush.xpose.msra.mxu0 0.0
    %407 = vmatpush.xpose.msra.mxu0 0.0
    %408 = vmatpush.xpose.msra.mxu0 0.0
    %409 = vmatpush.xpose.msra.mxu0 0.0
    %410 = vmatpush.xpose.msra.mxu0 0.0
    %411 = vmatpush.xpose.msra.mxu0 0.0
    %412 = vmatpush.xpose.msra.mxu0 0.0
    %413 = vmatpush.xpose.msra.mxu0 0.0
    %414 = vmatpush.xpose.msra.mxu0 0.0
    %415 = vmatpush.xpose.msra.mxu0 %v376
    %416 = vmatpush.xpose.msra.mxu0 %v374
    %417 = vmatmul.f32.gmra.mxu0 %v298
    %v418 = vpop.f32.mrf.mxu0
    %v419 = vadd.f32 0.0, %v418
    %420 = vdwg.mxu0
    %422 = vset.pattern.permute.xlu0 0
    %423 = vperm.xlu0 %422, %v396
    %v424 = vpop.permute.xlu0 %423
    %427 = vset.pattern.permute.xlu0 0
    %428 = vperm.xlu0 %427, %v399
    %v429 = vpop.permute.xlu0 %428
    %v431 = vperm.slane %v419, 0
    %v432 = vadd.f32 %v424, %v431
    %v433 = vadd.f32 %v429, %v431
    %v434 = vmul.f32 %v432, 0.2
    %v435 = vmul.f32 %v433, 0.2
    %v436 = vmax.f32 %v432, %v434
    %v437 = vmax.f32 %v433, %v435
    %v438 = vadd.f32 %v436, %v62
    %v439 = vadd.f32 %v437, %v63
    %v440 = vsel %vm232, %v438, -inf
    %441 = vmax.xlane.f32.xlu0 %v440
    %v442 = vpop.xlane.xlu0 %441
    %v443 = vsel %vm232, %v439, -inf
    %444 = vmax.xlane.f32.xlu0 %v443
    %v445 = vpop.xlane.xlu0 %444
    %v446 = vsub.f32 %v438, %v442
    %v447 = vsub.f32 %v439, %v445
    %v448 = vmul.f32 %v446, 1.442695
    %v449 = vpow.pop %v448
    %v450 = vmul.f32 %v447, 1.442695
    %v451 = vpow.pop %v450
    %v452 = vsel %vm232, %v449, 0.0
    %453 = vadd.xlane.f32.xlu0 %v452
    %v454 = vpop.xlane.xlu0 %453
    %v455 = vsel %vm232, %v451, 0.0
    %456 = vadd.xlane.f32.xlu0 %v455
    %v457 = vpop.xlane.xlu0 %456
    %v458 = vpack.c.bf16 %v451, %v449
    %v459 = vpack.c.bf16 %v376, %v374
    %v461 = vsel %vm232, %v458, 0
    %463 = vmatpush.bf16.msra.mxu0 0
    %464 = vmatpush.bf16.msra.mxu0 0
    %465 = vmatpush.bf16.msra.mxu0 0
    %466 = vmatpush.bf16.msra.mxu0 0
    %467 = vmatpush.bf16.msra.mxu0 0
    %468 = vmatpush.bf16.msra.mxu0 0
    %469 = vmatpush.bf16.msra.mxu0 0
    %470 = vmatpush.bf16.msra.mxu0 %v459
    %471 = vmatmul.bf16.gmra.mxu0 %v461
    %v472 = vpop.f32.mrf.mxu0
    %v473 = vadd.f32 0.0, %v472
    %v474 = vpop.f32.mrf.mxu0
    %v475 = vadd.f32 0.0, %v474
    %476 = vdwg.mxu0
    %v477 = vrcp.pop %v454
    %v478 = vrcp.pop %v457
    %v479 = vmul.f32 %v473, %v477
    %v480 = vmul.f32 %v475, %v478
    %v482 = vperm.slane %v315, 0
    %v484 = vadd.f32 %v479, %v482
    %v485 = vadd.f32 %v480, %v482
    %v486 = vmax.f32 %v484, 0.0
    %v487 = vmax.f32 %v485, 0.0
    %v488 = vld [vmem:[%s11] sm:$0xff]
    %v489 = vld [vmem:[%s11 + $0x8] sm:$0xff]
    %v490 = vld [vmem:[%s11 + $0x10] sm:$0xff]
    %v491 = vld [vmem:[%s11 + $0x18] sm:$0xff]
    %v492 = vld [vmem:[%s11 + $0x20] sm:$0xff]
    %v493 = vld [vmem:[%s11 + $0x28] sm:$0xff]
    %v494 = vld [vmem:[%s11 + $0x30] sm:$0xff]
    %v495 = vld [vmem:[%s11 + $0x38] sm:$0xff]
    %v496 = vld [vmem:[%s11 + $0x40] sm:$0xff]
    %v497 = vld [vmem:[%s11 + $0x48] sm:$0xff]
    %v498 = vld [vmem:[%s11 + $0x50] sm:$0xff]
    %v499 = vld [vmem:[%s11 + $0x58] sm:$0xff]
    %v500 = vld [vmem:[%s11 + $0x60] sm:$0xff]
    %v501 = vld [vmem:[%s11 + $0x68] sm:$0xff]
    %v502 = vld [vmem:[%s11 + $0x70] sm:$0xff]
    %v503 = vld [vmem:[%s11 + $0x78] sm:$0xff]
    %v504 = vld [vmem:[%s12] sm:$0x1]
    %vm505 = vcmp.gt.f32.partialorder %v64, 0.0
    %vm506 = vcmp.gt.f32.partialorder %v65, 0.0
    %v507 = vsel %vm505, 1, 0
    %v508 = vsel %vm506, 1, 0
    %509 = vset.pattern.permute.xlu0 0
    %510 = vperm.xlu0 %509, %v507
    %v511 = vpop.permute.xlu0 %510
    %512 = vset.pattern.permute.xlu0 0
    %513 = vperm.xlu0 %512, %v508
    %v514 = vpop.permute.xlu0 %513
    %vm515 = vcmp.eq.s32.totalorder %v511, 1
    %vm516 = vcmp.eq.s32.totalorder %v514, 1
    %v517 = vsel %vm515, %v486, -1e+30
    %v518 = vsel %vm516, %v487, -1e+30
    %v519 = vmax.f32 %v517, %v518
    %v520 = vrot.slane %v519, 4
    %v521 = vmax.f32 %v519, %v520
    %v522 = vrot.slane %v521, 2
    %v523 = vmax.f32 %v521, %v522
    %v524 = vrot.slane %v523, 1
    %v525 = vmax.f32 %v523, %v524
    %526 = vmatpush.msra.mxu0 %v503
    %527 = vmatpush.msra.mxu0 %v502
    %528 = vmatpush.msra.mxu0 %v501
    %529 = vmatpush.msra.mxu0 %v500
    %530 = vmatpush.msra.mxu0 %v499
    %531 = vmatpush.msra.mxu0 %v498
    %532 = vmatpush.msra.mxu0 %v497
    %533 = vmatpush.msra.mxu0 %v496
    %534 = vmatpush.msra.mxu0 %v495
    %535 = vmatpush.msra.mxu0 %v494
    %536 = vmatpush.msra.mxu0 %v493
    %537 = vmatpush.msra.mxu0 %v492
    %538 = vmatpush.msra.mxu0 %v491
    %539 = vmatpush.msra.mxu0 %v490
    %540 = vmatpush.msra.mxu0 %v489
    %541 = vmatpush.msra.mxu0 %v488
    %542 = vmatmul.f32.gmra.mxu0 %v525
    %v543 = vpop.f32.mrf.mxu0
    %v544 = vadd.f32 %v504, %v543
    %545 = vdwg.mxu0
    %546 = vst [vmem:[#allocation5] sm:$0x1] %v544
    %547 = vset.pattern.permute.xlu0 1
    %548 = vperm.xlu0 %547, %v507
    %v549 = vpop.permute.xlu0 %548
    %550 = vset.pattern.permute.xlu0 1
    %551 = vperm.xlu0 %550, %v508
    %v552 = vpop.permute.xlu0 %551
    %vm553 = vcmp.eq.s32.totalorder %v549, 1
    %vm554 = vcmp.eq.s32.totalorder %v552, 1
    %v555 = vsel %vm553, %v486, -1e+30
    %v556 = vsel %vm554, %v487, -1e+30
    %v557 = vmax.f32 %v555, %v556
    %v558 = vrot.slane %v557, 4
    %v559 = vmax.f32 %v557, %v558
    %v560 = vrot.slane %v559, 2
    %v561 = vmax.f32 %v559, %v560
    %v562 = vrot.slane %v561, 1
    %v563 = vmax.f32 %v561, %v562
    %564 = vmatpush.msra.mxu0 %v503
    %565 = vmatpush.msra.mxu0 %v502
    %566 = vmatpush.msra.mxu0 %v501
    %567 = vmatpush.msra.mxu0 %v500
    %568 = vmatpush.msra.mxu0 %v499
    %569 = vmatpush.msra.mxu0 %v498
    %570 = vmatpush.msra.mxu0 %v497
    %571 = vmatpush.msra.mxu0 %v496
    %572 = vmatpush.msra.mxu0 %v495
    %573 = vmatpush.msra.mxu0 %v494
    %574 = vmatpush.msra.mxu0 %v493
    %575 = vmatpush.msra.mxu0 %v492
    %576 = vmatpush.msra.mxu0 %v491
    %577 = vmatpush.msra.mxu0 %v490
    %578 = vmatpush.msra.mxu0 %v489
    %579 = vmatpush.msra.mxu0 %v488
    %580 = vmatmul.f32.gmra.mxu0 %v563
    %v581 = vpop.f32.mrf.mxu0
    %v582 = vadd.f32 %v504, %v581
    %583 = vdwg.mxu0
    %584 = vst [vmem:[#allocation5 + $0x1] sm:$0x1] %v582
    // Predicated region
    $region58: #{tpu_custom_call.1} parent=1 // pred_check
      _
    $region59: #{tpu_custom_call.1} parent=1 // pred_check_branch
      %586 = sbr.rel (0) target = $region61
    $region60: #{tpu_custom_call.1} parent=1 // pred_region
      %588 = vsyncadd [#allocation4], 0
      %s590 = sshll.u32 [#allocation5], 4
      %s591 = int_to_ptr.vmem [resolvable:$true] %s590
      %s592 = sshll.u32 %s13, 4
      %s593 = int_to_ptr.hbm [resolvable:$true] %s592
      %595 = dma.vmem_to_hbm [thread:$0]  %s591, 32, %s593, [#allocation4]
    $region61: #{tpu_custom_call.1} parent=1 // pred_fallthru
      _
    // Predicated region
    $region62: #{tpu_custom_call.1} parent=1 // pred_check
      _
    $region63: #{tpu_custom_call.1} parent=1 // pred_check_branch
      %597 = sbr.rel (0) target = $region65
    $region64: #{tpu_custom_call.1} parent=1 // pred_region
      %599 = dma.done [#allocation4], 32
    $region65: #{tpu_custom_call.1} parent=1 // pred_fallthru
      _
    %600 = vsyncpa [#allocation3], 1
    %601 = vsyncpa [#allocation4], 1

</llo_original>
